<compile_context>
chip_gen: v7x
topology: tpu7x:2x2x1
jax: 0.10.0
libtpu: 0.0.40
codegen_flags: <defaults>
</compile_context>

<pallas_src>
import functools

import jax
import jax.numpy as jnp
import numpy as np
from jax.experimental import pallas as pl
from jax.experimental.pallas import tpu as pltpu

SMOOTH = 1e-6

# Below this per-sample element count the pure-JAX (fused XLA) path wins.
_MIN_PALLAS_ELEMS_PER_SAMPLE = 1024


def _dice_kernel(p_ref, t_ref, dice_ref, st_ref, sp_ref, ctp_ref, *,
                 tile_r, valid_rows_last, ragged):
    """Grid = (sample, row-block). Input blocks are (1, tile_r, 128) in native dtype.

    dice_ref : (1, 8, 128) per-sample dice (broadcast scalar), written at last k.
    st/sp/ctp: (8, 128) f32 running sums of targets / sigmoid(preds) /
               sigmoid(preds)*targets for the current sample.
    """
    k = pl.program_id(1)
    nk = pl.num_programs(1)

    @pl.when(k == 0)
    def _init():
        st_ref[...] = jnp.zeros_like(st_ref)
        sp_ref[...] = jnp.zeros_like(sp_ref)
        ctp_ref[...] = jnp.zeros_like(ctp_ref)

    x = p_ref[0].astype(jnp.float32)                 # (tile_r, 128)
    p = 0.5 * (jnp.tanh(0.5 * x) + 1.0)              # sigmoid via a single EUP push
    t = t_ref[0].astype(jnp.float32)

    def _fold(v):
        # Pure-VPU fold into the (8,128) accumulator layout (tile_r % 8 == 0).
        return jnp.sum(v.reshape(tile_r // 8, 8, 128), axis=0)

    def _accumulate(pv, tv):
        st_ref[...] += _fold(tv)
        sp_ref[...] += _fold(pv)
        ctp_ref[...] += _fold(pv * tv)

    if not ragged:
        # Common case: tiling exactly covers r128 rows -> never any masking.
        _accumulate(p, t)
    else:
        @pl.when(k < nk - 1)
        def _hot():                                   # mask-free steady state
            _accumulate(p, t)

        @pl.when(k == nk - 1)
        def _cold():                                  # only the final block is ragged
            row = jax.lax.broadcasted_iota(jnp.int32, (tile_r, 128), 0)
            valid = row < valid_rows_last
            _accumulate(jnp.where(valid, p, 0.0), jnp.where(valid, t, 0.0))

    @pl.when(k == nk - 1)
    def _finalize():
        sum_t = jnp.sum(st_ref[...])
        sum_p = jnp.sum(sp_ref[...])
        ctp = jnp.sum(ctp_ref[...])
        # cfp = sum_p - ctp  =>  ctp + cfp == sum_p
        c_precision = ctp / (sum_p + SMOOTH)
        c_recall = ctp / (sum_t + SMOOTH)
        dice = 2.0 * (c_precision * c_recall) / (c_precision + c_recall + SMOOTH)
        dice_ref[...] = jnp.broadcast_to(dice, dice_ref.shape)


def _dice_loss_ref(preds, targets):
    """Pure-JAX reference mirroring the PyTorch module (also the tiny-shape path)."""
    p = jax.nn.sigmoid(preds.astype(jnp.float32))
    t = targets.astype(jnp.float32)
    axes = tuple(range(1, preds.ndim))
    y_true_count = t.sum(axes)
    ctp = (p * t).sum(axes)
    cfp = (p * (1.0 - t)).sum(axes)
    c_precision = ctp / (ctp + cfp + SMOOTH)
    c_recall = ctp / (y_true_count + SMOOTH)
    dice = 2.0 * (c_precision * c_recall) / (c_precision + c_recall + SMOOTH)
    return 1.0 - dice.mean()


@jax.jit
def dice_loss(preds, targets):
    """Pallas equivalent of DiceLoss().forward(preds, targets). Returns f32 scalar."""
    assert preds.shape == targets.shape
    n = preds.shape[0]
    d = int(np.prod(preds.shape[1:]))

    # Tiny problems: per-step pipeline overhead dominates; fused XLA is faster.
    if d < _MIN_PALLAS_ELEMS_PER_SAMPLE:
        return _dice_loss_ref(preds, targets).astype(jnp.float32)

    p2 = preds.reshape(n, d)        # native dtype, no wrapper up-cast
    t2 = targets.reshape(n, d)

    # Lane-dense layout: (n, rows, 128). Free reshape when d % 128 == 0.
    r128 = int(pl.cdiv(d, 128))
    dp = r128 * 128
    if dp != d:
        # Pad preds with a large negative so sigmoid(pad) == 0 exactly (tanh saturates)
        # and targets with 0 -> lane padding needs no in-kernel masking.
        p2 = jnp.pad(p2, ((0, 0), (0, dp - d)), constant_values=-30.0)
        t2 = jnp.pad(t2, ((0, 0), (0, dp - d)))
    p3 = p2.reshape(n, r128, 128)
    t3 = t2.reshape(n, r128, 128)

    p_item = jnp.dtype(preds.dtype).itemsize
    t_item = jnp.dtype(targets.dtype).itemsize
    # Sublane packing of the narrower dtype: f32 -> 8, bf16 -> 16, int8/fp8 -> 32.
    pack = max(8, 32 // min(p_item, t_item))

    # ~2 MiB per input block. 2 inputs x 2 pipeline buffers ~= 8 MiB: inside v5e's
    # 16 MiB scoped-VMEM default, and comfortably inside v6e (32/128 MiB) and
    # v7x (32/64 MiB) — no vmem_limit_bytes override required.
    block_bytes = 2 << 20
    target_rows = max(pack, (block_bytes // (128 * max(p_item, t_item))) // pack * pack)

    # Balanced tiling: every block the same size; at most the final block is ragged.
    num_k = int(pl.cdiv(r128, target_rows))
    tile_r = int(pl.cdiv(int(pl.cdiv(r128, num_k)), pack)) * pack
    num_k = int(pl.cdiv(r128, tile_r))
    valid_rows_last = r128 - (num_k - 1) * tile_r
    ragged = (num_k * tile_r) != r128

    kernel = functools.partial(
        _dice_kernel, tile_r=tile_r, valid_rows_last=valid_rows_last, ragged=ragged)

    cost = pl.CostEstimate(
        flops=6 * n * dp,
        transcendentals=n * dp,
        bytes_accessed=n * dp * (p_item + t_item) + n * 8 * 128 * 4,
    )

    out = pl.pallas_call(
        kernel,
        out_shape=jax.ShapeDtypeStruct((n, 8, 128), jnp.float32),
        grid_spec=pltpu.PrefetchScalarGridSpec(
            num_scalar_prefetch=0,
            grid=(n, num_k),
            in_specs=[
                pl.BlockSpec((1, tile_r, 128), lambda i, k: (i, k, 0)),
                pl.BlockSpec((1, tile_r, 128), lambda i, k: (i, k, 0)),
            ],
            out_specs=pl.BlockSpec((1, 8, 128), lambda i, k: (i, 0, 0)),
            scratch_shapes=[
                pltpu.VMEM((8, 128), jnp.float32),  # sum(targets)
                pltpu.VMEM((8, 128), jnp.float32),  # sum(sigmoid(preds))
                pltpu.VMEM((8, 128), jnp.float32),  # sum(sigmoid(preds)*targets)
            ],
        ),
        compiler_params=pltpu.CompilerParams(
            dimension_semantics=("parallel", "arbitrary"),
        ),
        cost_estimate=cost,
    )(p3, t3)

    dice_per_sample = out[:, 0, 0]
    return (1.0 - jnp.mean(dice_per_sample)).astype(jnp.float32)


if __name__ == "__main__":
    key = jax.random.PRNGKey(0)

    def _check(shape, preds_dtype=jnp.float32, rtol=1e-4, atol=1e-5):
        k1, k2 = jax.random.split(jax.random.fold_in(key, hash(shape) & 0xFFFF))
        preds = jax.random.normal(k1, shape, dtype=jnp.float32).astype(preds_dtype)
        targets = (jax.random.uniform(k2, shape) > 0.5).astype(jnp.float32)
        loss = dice_loss(preds, targets)
        jax.block_until_ready(loss)
        ref = _dice_loss_ref(preds, targets)
        np.testing.assert_allclose(np.asarray(loss), np.asarray(ref),
                                   rtol=rtol, atol=atol)

    # Primary small NCHW case (single mask-free block per sample).
    _check((2, 4, 16, 16))
    # Lane padding (sigmoid(-30) == 0) + ragged-last-block masked cold path.
    _check((2, 3, 33, 33))
    # Multi-row-block path with balanced, mask-free blocks (4608 rows -> 2 x 2304).
    _check((2, 1, 768, 768))
    # n=1, multi-k with a ragged last block and lane padding.
    _check((1, 1, 1000, 1000))
    # bf16 preds: exercises sublane-packing-aware tile rounding.
    _check((2, 1, 512, 512), preds_dtype=jnp.bfloat16, rtol=1e-3, atol=1e-3)
    # Tiny-problem fallback (pure-JAX path below the Pallas threshold).
    _check((2, 1, 8, 8))

    print("KERNEL_OK")
</pallas_src>

<mosaic_0001>
module attributes {stable_mosaic.version = 11 : i64} {
  func.func @_dice_kernel(%arg0: i32, %arg1: i32, %arg2: memref<1x8x128xf32, #tpu.memory_space<vmem>>, %arg3: memref<1x8x128xf32, #tpu.memory_space<vmem>>, %arg4: memref<1x8x128xf32, #tpu.memory_space<vmem>>, %arg5: memref<8x128xf32, #tpu.memory_space<vmem>>, %arg6: memref<8x128xf32, #tpu.memory_space<vmem>>, %arg7: memref<8x128xf32, #tpu.memory_space<vmem>>) attributes {dimension_semantics = [#tpu.dimension_semantics<parallel>, #tpu.dimension_semantics<arbitrary>], iteration_bounds = array<i64: 2, 1>, scalar_prefetch = 0 : i64, scratch_operands = 3 : i64, tpu.core_type = #tpu.core_type<tc>, window_params = [{transform_indices = @transform_0, window_bounds = array<i64: 1, 8, 128>}, {transform_indices = @transform_1, window_bounds = array<i64: 1, 8, 128>}, {transform_indices = @transform_2, window_bounds = array<i64: 1, 8, 128>}]} {
    %c0_i32 = arith.constant 0 : i32
    %0 = arith.cmpi eq, %arg1, %c0_i32 : i32
    %1 = arith.extui %0 : i1 to i32
    %c0_i32_0 = arith.constant 0 : i32
    %2 = arith.cmpi ne, %1, %c0_i32_0 : i32
    scf.if %2 {
      %cst_25 = arith.constant 0.000000e+00 : f32
      %33 = vector.broadcast %cst_25 : f32 to vector<8x128xf32>
      %c0_26 = arith.constant 0 : index
      %c0_27 = arith.constant 0 : index
      %34 = vector.load %arg5[%c0_26, %c0_27] : memref<8x128xf32, #tpu.memory_space<vmem>>, vector<8x128xf32>
      tpu.vector_store %arg5[%c0_26, %c0_27], %33 {strides = array<i32>} : memref<8x128xf32, #tpu.memory_space<vmem>>, vector<8x128xf32>,
      %cst_28 = arith.constant 0.000000e+00 : f32
      %35 = vector.broadcast %cst_28 : f32 to vector<8x128xf32>
      %c0_29 = arith.constant 0 : index
      %c0_30 = arith.constant 0 : index
      %36 = vector.load %arg6[%c0_29, %c0_30] : memref<8x128xf32, #tpu.memory_space<vmem>>, vector<8x128xf32>
      tpu.vector_store %arg6[%c0_29, %c0_30], %35 {strides = array<i32>} : memref<8x128xf32, #tpu.memory_space<vmem>>, vector<8x128xf32>,
      %cst_31 = arith.constant 0.000000e+00 : f32
      %37 = vector.broadcast %cst_31 : f32 to vector<8x128xf32>
      %c0_32 = arith.constant 0 : index
      %c0_33 = arith.constant 0 : index
      %38 = vector.load %arg7[%c0_32, %c0_33] : memref<8x128xf32, #tpu.memory_space<vmem>>, vector<8x128xf32>
      tpu.vector_store %arg7[%c0_32, %c0_33], %37 {strides = array<i32>} : memref<8x128xf32, #tpu.memory_space<vmem>>, vector<8x128xf32>,
    } else {
    }
    %c0 = arith.constant 0 : index
    %c0_1 = arith.constant 0 : index
    %c0_2 = arith.constant 0 : index
    %3 = vector.load %arg2[%c0, %c0_1, %c0_2] : memref<1x8x128xf32, #tpu.memory_space<vmem>>, vector<1x8x128xf32>
    %4 = vector.shape_cast %3 : vector<1x8x128xf32> to vector<8x128xf32>
    %cst = arith.constant 5.000000e-01 : f32
    %5 = vector.broadcast %cst : f32 to vector<8x128xf32>
    %6 = arith.mulf %5, %4 : vector<8x128xf32>
    %7 = math.tanh %6 : vector<8x128xf32>
    %cst_3 = arith.constant 1.000000e+00 : f32
    %8 = vector.broadcast %cst_3 : f32 to vector<8x128xf32>
    %9 = arith.addf %7, %8 : vector<8x128xf32>
    %cst_4 = arith.constant 5.000000e-01 : f32
    %10 = vector.broadcast %cst_4 : f32 to vector<8x128xf32>
    %11 = arith.mulf %10, %9 : vector<8x128xf32>
    %c0_5 = arith.constant 0 : index
    %c0_6 = arith.constant 0 : index
    %c0_7 = arith.constant 0 : index
    %12 = vector.load %arg3[%c0_5, %c0_6, %c0_7] : memref<1x8x128xf32, #tpu.memory_space<vmem>>, vector<1x8x128xf32>
    %13 = vector.shape_cast %12 : vector<1x8x128xf32> to vector<8x128xf32>
    %c0_8 = arith.constant 0 : index
    %c0_9 = arith.constant 0 : index
    %14 = vector.load %arg5[%c0_8, %c0_9] : memref<8x128xf32, #tpu.memory_space<vmem>>, vector<8x128xf32>
    %15 = vector.shape_cast %13 : vector<8x128xf32> to vector<1x8x128xf32>
    %cst_10 = arith.constant dense<0.000000e+00> : vector<8x128xf32>
    %16 = vector.multi_reduction <add>, %15, %cst_10 [0] : vector<1x8x128xf32> to vector<8x128xf32>
    %17 = arith.addf %14, %16 : vector<8x128xf32>
    %c0_11 = arith.constant 0 : index
    %c0_12 = arith.constant 0 : index
    %18 = vector.load %arg5[%c0_11, %c0_12] : memref<8x128xf32, #tpu.memory_space<vmem>>, vector<8x128xf32>
    tpu.vector_store %arg5[%c0_11, %c0_12], %17 {strides = array<i32>} : memref<8x128xf32, #tpu.memory_space<vmem>>, vector<8x128xf32>,
    %c0_13 = arith.constant 0 : index
    %c0_14 = arith.constant 0 : index
    %19 = vector.load %arg6[%c0_13, %c0_14] : memref<8x128xf32, #tpu.memory_space<vmem>>, vector<8x128xf32>
    %20 = vector.shape_cast %11 : vector<8x128xf32> to vector<1x8x128xf32>
    %cst_15 = arith.constant dense<0.000000e+00> : vector<8x128xf32>
    %21 = vector.multi_reduction <add>, %20, %cst_15 [0] : vector<1x8x128xf32> to vector<8x128xf32>
    %22 = arith.addf %19, %21 : vector<8x128xf32>
    %c0_16 = arith.constant 0 : index
    %c0_17 = arith.constant 0 : index
    %23 = vector.load %arg6[%c0_16, %c0_17] : memref<8x128xf32, #tpu.memory_space<vmem>>, vector<8x128xf32>
    tpu.vector_store %arg6[%c0_16, %c0_17], %22 {strides = array<i32>} : memref<8x128xf32, #tpu.memory_space<vmem>>, vector<8x128xf32>,
    %c0_18 = arith.constant 0 : index
    %c0_19 = arith.constant 0 : index
    %24 = vector.load %arg7[%c0_18, %c0_19] : memref<8x128xf32, #tpu.memory_space<vmem>>, vector<8x128xf32>
    %25 = arith.mulf %11, %13 : vector<8x128xf32>
    %26 = vector.shape_cast %25 : vector<8x128xf32> to vector<1x8x128xf32>
    %cst_20 = arith.constant dense<0.000000e+00> : vector<8x128xf32>
    %27 = vector.multi_reduction <add>, %26, %cst_20 [0] : vector<1x8x128xf32> to vector<8x128xf32>
    %28 = arith.addf %24, %27 : vector<8x128xf32>
    %c0_21 = arith.constant 0 : index
    %c0_22 = arith.constant 0 : index
    %29 = vector.load %arg7[%c0_21, %c0_22] : memref<8x128xf32, #tpu.memory_space<vmem>>, vector<8x128xf32>
    tpu.vector_store %arg7[%c0_21, %c0_22], %28 {strides = array<i32>} : memref<8x128xf32, #tpu.memory_space<vmem>>, vector<8x128xf32>,
    %c0_i32_23 = arith.constant 0 : i32
    %30 = arith.cmpi eq, %arg1, %c0_i32_23 : i32
    %31 = arith.extui %30 : i1 to i32
    %c0_i32_24 = arith.constant 0 : i32
    %32 = arith.cmpi ne, %31, %c0_i32_24 : i32
    scf.if %32 {
      %c0_25 = arith.constant 0 : index
      %c0_26 = arith.constant 0 : index
      %33 = vector.load %arg5[%c0_25, %c0_26] : memref<8x128xf32, #tpu.memory_space<vmem>>, vector<8x128xf32>
      %34 = vector.shape_cast %33 : vector<8x128xf32> to vector<1x8x128xf32>
      %cst_27 = arith.constant dense<0.000000e+00> : vector<1xf32>
      %35 = vector.multi_reduction <add>, %34, %cst_27 [1, 2] : vector<1x8x128xf32> to vector<1xf32>
      %36 = vector.shape_cast %35 : vector<1xf32> to vector<1x1x1xf32>
      %37 = vector.extract %36[0, 0, 0] : f32 from vector<1x1x1xf32>
      %c0_28 = arith.constant 0 : index
      %c0_29 = arith.constant 0 : index
      %38 = vector.load %arg6[%c0_28, %c0_29] : memref<8x128xf32, #tpu.memory_space<vmem>>, vector<8x128xf32>
      %39 = vector.shape_cast %38 : vector<8x128xf32> to vector<1x8x128xf32>
      %cst_30 = arith.constant dense<0.000000e+00> : vector<1xf32>
      %40 = vector.multi_reduction <add>, %39, %cst_30 [1, 2] : vector<1x8x128xf32> to vector<1xf32>
      %41 = vector.shape_cast %40 : vector<1xf32> to vector<1x1x1xf32>
      %42 = vector.extract %41[0, 0, 0] : f32 from vector<1x1x1xf32>
      %c0_31 = arith.constant 0 : index
      %c0_32 = arith.constant 0 : index
      %43 = vector.load %arg7[%c0_31, %c0_32] : memref<8x128xf32, #tpu.memory_space<vmem>>, vector<8x128xf32>
      %44 = vector.shape_cast %43 : vector<8x128xf32> to vector<1x8x128xf32>
      %cst_33 = arith.constant dense<0.000000e+00> : vector<1xf32>
      %45 = vector.multi_reduction <add>, %44, %cst_33 [1, 2] : vector<1x8x128xf32> to vector<1xf32>
      %46 = vector.shape_cast %45 : vector<1xf32> to vector<1x1x1xf32>
      %47 = vector.extract %46[0, 0, 0] : f32 from vector<1x1x1xf32>
      %cst_34 = arith.constant 9.99999997E-7 : f32
      %48 = arith.addf %42, %cst_34 : f32
      %49 = arith.divf %47, %48 : f32
      %cst_35 = arith.constant 9.99999997E-7 : f32
      %50 = arith.addf %37, %cst_35 : f32
      %51 = arith.divf %47, %50 : f32
      %52 = arith.mulf %49, %51 : f32
      %cst_36 = arith.constant 2.000000e+00 : f32
      %53 = arith.mulf %cst_36, %52 : f32
      %54 = arith.addf %49, %51 : f32
      %cst_37 = arith.constant 9.99999997E-7 : f32
      %55 = arith.addf %54, %cst_37 : f32
      %56 = arith.divf %53, %55 : f32
      %57 = vector.broadcast %56 : f32 to vector<1x8x128xf32>
      %c0_38 = arith.constant 0 : index
      %c0_39 = arith.constant 0 : index
      %c0_40 = arith.constant 0 : index
      %58 = vector.load %arg4[%c0_38, %c0_39, %c0_40] : memref<1x8x128xf32, #tpu.memory_space<vmem>>, vector<1x8x128xf32>
      tpu.vector_store %arg4[%c0_38, %c0_39, %c0_40], %57 {strides = array<i32>} : memref<1x8x128xf32, #tpu.memory_space<vmem>>, vector<1x8x128xf32>,
    } else {
    }
    return
  }
  func.func @transform_0(%arg0: i32, %arg1: i32) -> (i32, i32, i32) {
    %c0_i32 = arith.constant 0 : i32
    %c0_i32_0 = arith.constant 0 : i32
    return %arg0, %arg1, %c0_i32 : i32, i32, i32
  }
  func.func @transform_1(%arg0: i32, %arg1: i32) -> (i32, i32, i32) {
    %c0_i32 = arith.constant 0 : i32
    %c0_i32_0 = arith.constant 0 : i32
    return %arg0, %arg1, %c0_i32 : i32, i32, i32
  }
  func.func @transform_2(%arg0: i32, %arg1: i32) -> (i32, i32, i32) {
    %c0_i32 = arith.constant 0 : i32
    %c0_i32_0 = arith.constant 0 : i32
    %c0_i32_1 = arith.constant 0 : i32
    return %arg0, %c0_i32, %c0_i32_0 : i32, i32, i32
  }
}

</mosaic_0001>

<llo_original>
// kernel: dice_loss.1
$region0: #{dice_loss.1}
  #allocation0 [shape = 'u32[]', space=smem, size = 0x4, offset = 0x4, fixed_abs, tag = 'smem constant byte address 0x4 - core index']
  #allocation1 [shape = 'u32[144,128]{1,0:T(1,128)}', space=vmem, size = 0x12000, scoped, tag = 'internal scratch']
  #allocation2 [shape = 'f32[8,128]{1,0:T(8,128)}', space=vmem, size = 0x1000, scoped, tag = 'scratch operand']
  #allocation3 [shape = 'f32[8,128]{1,0:T(8,128)}', space=vmem, size = 0x1000, scoped, tag = 'scratch operand']
  #allocation4 [shape = 'f32[8,128]{1,0:T(8,128)}', space=vmem, size = 0x1000, scoped, tag = 'scratch operand']
  %s0 = inlined_call_operand.vmem [shape: f32[2,8,128], index: 0, kind: input, shape index: {}]
  %s1 = inlined_call_operand.vmem [shape: f32[2,8,128], index: 1, kind: input, shape index: {}]
  %s2 = inlined_call_operand.vmem [shape: f32[2,8,128], index: 2, kind: output, shape index: {}]
  %s3 = sld [smem:[#allocation0]]
  $region49: #{dice_loss.1} parent=0
    _
  %s5 = ssub.s32 1, %s3
  %s6 = scalar_select 0, %s5, %s3
  loop: start=0, step=1, limit=4
  $region2: #{dice_loss.1} parent=0 // loop_pre_header
    _
  $region3: #{dice_loss.1} parent=0 // loop_header
    %s8 = sphi 0, %s12
    %p9 = scmp.ge.s32.totalorder %s8, 4
    %s15 = sphi 0, %s27
    %s16 = sphi 0, %s23
    %s17 = sphi 0, %s15
    %s18 = sphi 0, %s16
    %s19 = sphi 0, %s17
    %s20 = sphi 0, %s18
    %s32 = sphi 0, %s34
    %s35 = sphi 0, %s32
    %s36 = sphi 0, %s35
    %s52 = sphi 0, %s36
    %s60 = sphi 0, %s62
    %s63 = sphi 0, %s60
    %s64 = sphi 0, %s63
    %s80 = sphi 0, %s64
    %s86 = sphi 0, %s88
    %s89 = sphi 0, %s86
    %s90 = sphi 0, %s89
    %s106 = sphi 0, %s90
  $region4: #{dice_loss.1} parent=0 // loop_header_branch
    %11 = sbr.rel (%p9) target = $region8
  $region5: #{dice_loss.1} parent=0 // loop_body
    %s13 = ssub.s32 %s8, 1
    %s14 = ssub.s32 %s8, 2
    %s21 = sadd.s32 1, %s16
    %p22 = scmp.ge.s32.totalorder %s21, 1
    %s23 = scalar_select %p22, 0, %s21
    %s24 = sadd.s32 1, %s15
    %s25 = scalar_select %p22, %s24, %s15
    %p26 = scmp.ge.s32.totalorder %s25, 2
    %s27 = scalar_select %p26, 0, %s25
    %s28 = ssub.s32 %s15, %s27
    %s29 = ssub.s32 %s16, %s23
    %s30 = sor.u32 %s28, %s29
    %p31 = scmp.eq.s32.totalorder %s30, 0
    %s33 = sadd.s32 %s32, 1
    %s34 = scalar_select %p31, %s32, %s33
    %p37 = pneg %p31
    %p38 = scmp.eq.s32.totalorder %s8, 1
    %p39 = por %p37, %p38
    %p40 = scmp.ne.s32.totalorder %s32, %s35
    %p41 = scmp.eq.s32.totalorder %s8, 0
    %p42 = por %p40, %p41
    %p43 = scmp.ne.s32.totalorder %s32, %s35
    %p44 = scmp.eq.s32.totalorder %s13, 1
    %p45 = por %p43, %p44
    %p46 = scmp.ne.s32.totalorder %s35, %s36
    %p47 = scmp.eq.s32.totalorder %s13, 0
    %p48 = por %p46, %p47
    %p49 = scmp.ne.s32.totalorder %s35, %s36
    %p50 = scmp.eq.s32.totalorder %s14, 1
    %p51 = por %p49, %p50
    %p53 = scmp.ne.s32.totalorder %s36, %s52
    %p54 = scmp.eq.s32.totalorder %s14, 0
    %p55 = por %p53, %p54
    %s56 = ssub.s32 %s15, %s27
    %s57 = ssub.s32 %s16, %s23
    %s58 = sor.u32 %s56, %s57
    %p59 = scmp.eq.s32.totalorder %s58, 0
    %s61 = sadd.s32 %s60, 1
    %s62 = scalar_select %p59, %s60, %s61
    %p65 = pneg %p59
    %p66 = scmp.eq.s32.totalorder %s8, 1
    %p67 = por %p65, %p66
    %p68 = scmp.ne.s32.totalorder %s60, %s63
    %p69 = scmp.eq.s32.totalorder %s8, 0
    %p70 = por %p68, %p69
    %p71 = scmp.ne.s32.totalorder %s60, %s63
    %p72 = scmp.eq.s32.totalorder %s13, 1
    %p73 = por %p71, %p72
    %p74 = scmp.ne.s32.totalorder %s63, %s64
    %p75 = scmp.eq.s32.totalorder %s13, 0
    %p76 = por %p74, %p75
    %p77 = scmp.ne.s32.totalorder %s63, %s64
    %p78 = scmp.eq.s32.totalorder %s14, 1
    %p79 = por %p77, %p78
    %p81 = scmp.ne.s32.totalorder %s64, %s80
    %p82 = scmp.eq.s32.totalorder %s14, 0
    %p83 = por %p81, %p82
    %s84 = ssub.s32 %s15, %s27
    %p85 = scmp.eq.s32.totalorder %s84, 0
    %s87 = sadd.s32 %s86, 1
    %s88 = scalar_select %p85, %s86, %s87
    %p91 = pneg %p85
    %p92 = scmp.eq.s32.totalorder %s8, 1
    %p93 = por %p91, %p92
    %p94 = scmp.ne.s32.totalorder %s86, %s89
    %p95 = scmp.eq.s32.totalorder %s8, 0
    %p96 = por %p94, %p95
    %p97 = scmp.ne.s32.totalorder %s86, %s89
    %p98 = scmp.eq.s32.totalorder %s13, 1
    %p99 = por %p97, %p98
    %p100 = scmp.ne.s32.totalorder %s89, %s90
    %p101 = scmp.eq.s32.totalorder %s13, 0
    %p102 = por %p100, %p101
    %p103 = scmp.ne.s32.totalorder %s89, %s90
    %p104 = scmp.eq.s32.totalorder %s14, 1
    %p105 = por %p103, %p104
    %p107 = scmp.ne.s32.totalorder %s90, %s106
    %p108 = scmp.eq.s32.totalorder %s14, 0
    %p109 = por %p107, %p108
    %p110 = scmp.le.s32.totalorder 1, %s8
    %p111 = scmp.lt.s32.totalorder %s8, 3
    %p112 = pnand %p110, %p111
    %p113 = pneg %p112
    // Predicated region
    $region9: #{dice_loss.1} parent=5 // pred_check
      _
    $region10: #{dice_loss.1} parent=5 // pred_check_branch
      %115 = sbr.rel (%p112) target = $region12
    $region11: #{dice_loss.1} parent=5 // pred_region
      %s116 = ssub.s32 %s8, 1
    $region12: #{dice_loss.1} parent=5 // pred_fallthru
      _
    %p117 = scmp.lt.s32.totalorder %s8, 2
    // Predicated region
    $region13: #{dice_loss.1} parent=5 // pred_check
      %p118 = pneg %p117
    $region14: #{dice_loss.1} parent=5 // pred_check_branch
      %120 = sbr.rel (%p118) target = $region16
    $region15: #{dice_loss.1} parent=5 // pred_region
      // Predicated region
      $region17: #{dice_loss.1} parent=15 // pred_check
        %p121 = pneg %p42
      $region18: #{dice_loss.1} parent=15 // pred_check_branch
        %123 = sbr.rel (%p121) target = $region20
      $region19: #{dice_loss.1} parent=15 // pred_region
        %p124 = scmp.lt.s32.totalorder %s15, 1
        %s125 = scalar_select %p124, %s15, 1
        %p126 = scmp.lt.s32.totalorder %s16, 0
        %s127 = scalar_select %p126, %s16, 0
        %s128 = sadd.s32 %s127, %s125
        %s129 = smul.addr %s128, 8
        %s130 = scalar_lea.vmem %s0, %s129
      $region20: #{dice_loss.1} parent=15 // pred_fallthru
        _
      // Predicated region
      $region21: #{dice_loss.1} parent=15 // pred_check
        %p131 = pneg %p70
      $region22: #{dice_loss.1} parent=15 // pred_check_branch
        %133 = sbr.rel (%p131) target = $region24
      $region23: #{dice_loss.1} parent=15 // pred_region
        %p134 = scmp.lt.s32.totalorder %s15, 1
        %s135 = scalar_select %p134, %s15, 1
        %p136 = scmp.lt.s32.totalorder %s16, 0
        %s137 = scalar_select %p136, %s16, 0
        %s138 = sadd.s32 %s137, %s135
        %s139 = smul.addr %s138, 8
        %s140 = scalar_lea.vmem %s1, %s139
      $region24: #{dice_loss.1} parent=15 // pred_fallthru
        _
    $region16: #{dice_loss.1} parent=5 // pred_fallthru
      _
    %p141 = scmp.le.s32.totalorder 1, %s8
    %p142 = scmp.lt.s32.totalorder %s8, 3
    %p143 = pnand %p141, %p142
    %p144 = pneg %p143
    // Predicated region
    $region25: #{dice_loss.1} parent=5 // pred_check
      _
    $region26: #{dice_loss.1} parent=5 // pred_check_branch
      %146 = sbr.rel (%p143) target = $region28
    $region27: #{dice_loss.1} parent=5 // pred_region
      %s147 = ssub.s32 %s8, 1
      %p148 = scmp.lt.s32.totalorder %s17, 1
      %s149 = scalar_select %p148, %s17, 1
      %p150 = scmp.lt.s32.totalorder %s18, 0
      %s151 = scalar_select %p150, %s18, 0
      %s152 = sadd.s32 %s151, %s149
      %s153 = smul.addr %s152, 8
      %s154 = scalar_lea.vmem %s0, %s153
      %p155 = pneg %p48
      %p156 = pneg %p45
      %p157 = scmp.lt.s32.totalorder %s17, 1
      %s158 = scalar_select %p157, %s17, 1
      %p159 = scmp.lt.s32.totalorder %s18, 0
      %s160 = scalar_select %p159, %s18, 0
      %s161 = sadd.s32 %s160, %s158
      %s162 = smul.addr %s161, 8
      %s163 = scalar_lea.vmem %s1, %s162
      %p164 = pneg %p76
      %p165 = pneg %p73
      %p166 = pneg %p102
      %p167 = pneg %p99
      %p168 = scmp.lt.s32.totalorder %s17, 1
      %s169 = scalar_select %p168, %s17, 1
      %s170 = smul.addr %s169, 8
      %s171 = scalar_lea.vmem %s2, %s170
      %p172 = scmp.lt.s32.totalorder %s17, 1
      %s173 = scalar_select %p172, %s17, 1
      %p174 = scmp.lt.s32.totalorder %s18, 0
      %s175 = scalar_select %p174, %s18, 0
      %s176 = sadd.s32 %s175, %s173
      %s177 = smul.addr %s176, 8
      %s178 = scalar_lea.vmem %s0, %s177
      %p179 = scmp.lt.s32.totalorder %s17, 1
      %s180 = scalar_select %p179, %s17, 1
      %p181 = scmp.lt.s32.totalorder %s18, 0
      %s182 = scalar_select %p181, %s18, 0
      %s183 = sadd.s32 %s182, %s180
      %s184 = smul.addr %s183, 8
      %s185 = scalar_lea.vmem %s1, %s184
      %p186 = scmp.lt.s32.totalorder %s17, 1
      %s187 = scalar_select %p186, %s17, 1
      %s188 = smul.addr %s187, 8
      %s189 = scalar_lea.vmem %s2, %s188
      %p190 = scmp.eq.s32.totalorder %s18, 0
      // Predicated region
      $region29: #{dice_loss.1} parent=27 // pred_check
        %p191 = pneg %p190
      $region30: #{dice_loss.1} parent=27 // pred_check_branch
        %193 = sbr.rel (%p191) target = $region32
      $region31: #{dice_loss.1} parent=27 // pred_region
        %194 = vst [vmem:[#allocation2] sm:$0xff] 0.0
        %195 = vst [vmem:[#allocation3] sm:$0xff] 0.0
        %196 = vst [vmem:[#allocation4] sm:$0xff] 0.0
      $region32: #{dice_loss.1} parent=27 // pred_fallthru
        _
      %v197 = vld [vmem:[%s178] sm:$0xff]
      %v198 = vmul.f32 %v197, 0.5
      %v199 = vtanh.pop %v198
      %v200 = vadd.f32 %v199, 1.0
      %v201 = vmul.f32 %v200, 0.5
      %v202 = vld [vmem:[%s185] sm:$0xff]
      %v203 = vld [vmem:[#allocation2] sm:$0xff]
      %v204 = vadd.f32 %v202, 0.0
      %v205 = vadd.f32 %v203, %v204
      %206 = vst [vmem:[#allocation2] sm:$0xff] %v205
      %v207 = vld [vmem:[#allocation3] sm:$0xff]
      %v208 = vadd.f32 %v201, 0.0
      %v209 = vadd.f32 %v207, %v208
      %210 = vst [vmem:[#allocation3] sm:$0xff] %v209
      %v211 = vld [vmem:[#allocation4] sm:$0xff]
      %v212 = vmul.f32 %v201, %v202
      %v213 = vadd.f32 %v212, 0.0
      %v214 = vadd.f32 %v211, %v213
      %215 = vst [vmem:[#allocation4] sm:$0xff] %v214
      // Predicated region
      $region33: #{dice_loss.1} parent=27 // pred_check
        %p216 = pneg %p190
      $region34: #{dice_loss.1} parent=27 // pred_check_branch
        %218 = sbr.rel (%p216) target = $region36
      $region35: #{dice_loss.1} parent=27 // pred_region
        %v219 = vld [vmem:[#allocation2] sm:$0xff]
        %220 = vadd.xlane.f32.xlu0 %v219
        %v221 = vpop.xlane.xlu0 %220
        %v222 = vrot.slane %v221, 4
        %v223 = vadd.f32 %v221, %v222
        %v224 = vrot.slane %v223, 2
        %v225 = vadd.f32 %v223, %v224
        %v226 = vrot.slane %v225, 1
        %v227 = vadd.f32 %v225, %v226
        %s228 = vtos %v227
        %v229 = vld [vmem:[#allocation3] sm:$0xff]
        %230 = vadd.xlane.f32.xlu0 %v229
        %v231 = vpop.xlane.xlu0 %230
        %v232 = vrot.slane %v231, 4
        %v233 = vadd.f32 %v231, %v232
        %v234 = vrot.slane %v233, 2
        %v235 = vadd.f32 %v233, %v234
        %v236 = vrot.slane %v235, 1
        %v237 = vadd.f32 %v235, %v236
        %s238 = vtos %v237
        %v239 = vld [vmem:[#allocation4] sm:$0xff]
        %240 = vadd.xlane.f32.xlu0 %v239
        %v241 = vpop.xlane.xlu0 %240
        %v242 = vrot.slane %v241, 4
        %v243 = vadd.f32 %v241, %v242
        %v244 = vrot.slane %v243, 2
        %v245 = vadd.f32 %v243, %v244
        %v246 = vrot.slane %v245, 1
        %v247 = vadd.f32 %v245, %v246
        %s248 = vtos %v247
        %s249 = sadd.f32 %s238, 1e-06
        %v250 = vstv %s249
        %v251 = vrcp.pop %v250
        %s252 = vtos %v251
        %s253 = smul.f32 %s248, %s252
        %s254 = sadd.f32 %s228, 1e-06
        %v255 = vstv %s254
        %v256 = vrcp.pop %v255
        %s257 = vtos %v256
        %s258 = smul.f32 %s248, %s257
        %s259 = smul.f32 %s253, %s258
        %s260 = smul.f32 %s259, 2.0
        %s261 = sadd.f32 %s253, %s258
        %s262 = sadd.f32 %s261, 1e-06
        %v263 = vstv %s262
        %v264 = vrcp.pop %v263
        %s265 = vtos %v264
        %s266 = smul.f32 %s260, %s265
        %v267 = vstv %s266
        %268 = vst [vmem:[%s189] sm:$0xff] %v267
      $region36: #{dice_loss.1} parent=27 // pred_fallthru
        _
      %p269 = scmp.lt.s32.totalorder %s17, 1
      %s270 = scalar_select %p269, %s17, 1
      %s271 = smul.addr %s270, 8
      %s272 = scalar_lea.vmem %s2, %s271
      // Predicated region
      $region37: #{dice_loss.1} parent=27 // pred_check
        %p273 = pneg %p99
      $region38: #{dice_loss.1} parent=27 // pred_check_branch
        %275 = sbr.rel (%p273) target = $region40
      $region39: #{dice_loss.1} parent=27 // pred_region
        _
      $region40: #{dice_loss.1} parent=27 // pred_fallthru
        _
    $region28: #{dice_loss.1} parent=5 // pred_fallthru
      _
    %p276 = scmp.le.s32.totalorder 2, %s8
    // Predicated region
    $region41: #{dice_loss.1} parent=5 // pred_check
      %p277 = pneg %p276
    $region42: #{dice_loss.1} parent=5 // pred_check_branch
      %279 = sbr.rel (%p277) target = $region44
    $region43: #{dice_loss.1} parent=5 // pred_region
      %s280 = ssub.s32 %s8, 2
      // Predicated region
      $region45: #{dice_loss.1} parent=43 // pred_check
        %p281 = pneg %p105
      $region46: #{dice_loss.1} parent=43 // pred_check_branch
        %283 = sbr.rel (%p281) target = $region48
      $region47: #{dice_loss.1} parent=43 // pred_region
        %p284 = scmp.lt.s32.totalorder %s19, 1
        %s285 = scalar_select %p284, %s19, 1
        %s286 = smul.addr %s285, 8
        %s287 = scalar_lea.vmem %s2, %s286
      $region48: #{dice_loss.1} parent=43 // pred_fallthru
        _
    $region44: #{dice_loss.1} parent=5 // pred_fallthru
      _
  $region6: #{dice_loss.1} parent=0 // loop_footer
    %s12 = sadd.s32 1, %s8
  $region7: #{dice_loss.1} parent=0 // loop_footer_branch
    %7 = sbr.rel target = $region3
  $region8: #{dice_loss.1} parent=0 // loop_exit
    _

</llo_original>
